<compile_context>
chip_gen: v5e
topology: v5e:2x2
jax: 0.10.0
libtpu: 0.0.40
codegen_flags: <defaults>
</compile_context>

<pallas_src>
import functools

import jax
import jax.numpy as jnp
from jax.experimental import pallas as pl
from jax.experimental.pallas import tpu as pltpu


# ------------------------------ packing helpers ------------------------------

_ROW_ALIGN = 8      # sublane alignment
_LANE_ALIGN = 128   # lane alignment


def _round_up(n, m):
    return ((n + m - 1) // m) * m


def _pad2d(a, rows, cols):
    r, c = a.shape
    return jnp.pad(a, ((0, rows - r), (0, cols - c)))


# ------------------------------- Pallas kernel -------------------------------

def _decoder_mlp_kernel(x_ref, p_ref, o_ref, *, layout, num_hidden, seq, batch):
    """Fused DecoderMLP forward.

    x_ref : [batch, seq, feat] (seq > 1) or [batch, feat] (seq == 1)
    p_ref : [R, 128] packed parameter buffer (static offsets in `layout`)
    o_ref : [batch, out]
    """
    # y[m, n] = sum_k x[m, k] * w[n, k]  -- transposed contraction, no w.T
    contract = (((1,), (1,)), ((), ()))

    x = x_ref[...]
    if seq > 1:
        # seq-major rows: row s*batch + b = x[b, s, :] -> later head packing
        # uses contiguous, sublane-aligned blocks (batch is a multiple of 8
        # here; other batch sizes stay correct, just less aligned).
        h = jnp.concatenate([x[:, s, :] for s in range(seq)], axis=0)
    else:
        h = x

    # Hidden stack: all (seq*batch) independent rows in one matmul per layer;
    # activations never leave vregs/VMEM.
    for i in range(num_hidden):
        wr, wl, wk = layout[f"w{i}"]
        br, bl = layout[f"b{i}"]
        w = p_ref[wr:wr + wl, 0:wk]          # [L, in_f] static slice
        b = p_ref[br:br + 1, 0:bl]           # [1, L]
        h = jax.lax.dot_general(h, w, contract,
                                preferred_element_type=jnp.float32)
        h = jnp.maximum(h + b, 0.0)          # f32 epilogue (v5e-safe)

    if seq > 1:
        # In-register lane concat -> [batch, seq*latent]; whole multi-node
        # head becomes ONE matmul with K = seq*latent.
        h = jnp.concatenate(
            [h[s * batch:(s + 1) * batch, :] for s in range(seq)], axis=1)

    owr, on, ok = layout["head_w"]
    obr, obl = layout["head_b"]
    w_out = p_ref[owr:owr + on, 0:ok]        # [out, K]
    b_out = p_ref[obr:obr + 1, 0:obl]        # [1, out]
    y = jax.lax.dot_general(h, w_out, contract,
                            preferred_element_type=jnp.float32) + b_out
    o_ref[...] = y.astype(o_ref.dtype)


# ---------------------------- Module (parameters) ----------------------------

def _torch_linear_init(key, out_f, in_f):
    # Mimic nn.Linear default: U(-1/sqrt(fan_in), +1/sqrt(fan_in))
    kw, kb = jax.random.split(key)
    bound = 1.0 / jnp.sqrt(jnp.float32(in_f))
    w = jax.random.uniform(kw, (out_f, in_f), jnp.float32, -bound, bound)
    b = jax.random.uniform(kb, (out_f,), jnp.float32, -bound, bound)
    return w, b


class DecoderMLPPallas:
    def __init__(self, input_size, latent_space_size, output_size,
                 layer_num, sequence_length, key):
        self.sequence_length = sequence_length
        self.latent = latent_space_size
        self.output_size = output_size

        keys = jax.random.split(key, layer_num + 1)
        self.hiddens = []
        for i in range(layer_num):
            in_f = latent_space_size if i > 0 else input_size
            self.hiddens.append(_torch_linear_init(keys[i], latent_space_size, in_f))

        if sequence_length <= 1:
            self.out_w, self.out_b = _torch_linear_init(
                keys[-1], output_size, latent_space_size)
            head_w = self.out_w                      # [out, latent]
            head_b = self.out_b                      # [out]
        else:
            okeys = jax.random.split(keys[-1], sequence_length)
            ws, bs = zip(*[_torch_linear_init(k, output_size, latent_space_size)
                           for k in okeys])
            self.out_w = jnp.stack(ws)               # [seq, out, latent]
            self.out_b = jnp.stack(bs)               # [seq, out]
            # Collapsed head (exact: the per-position sum is linear):
            #   y[b,o] = sum_{s,l} h[b,s,l]*out_w[s,o,l] + sum_s out_b[s,o]
            head_w = jnp.transpose(self.out_w, (1, 0, 2)).reshape(
                output_size, sequence_length * latent_space_size)
            head_b = jnp.sum(self.out_b, axis=0)

        # ---- pack ALL parameters into ONE lane-dense, row-aligned buffer ----
        widths = [w.shape[1] for w, _ in self.hiddens] + [
            head_w.shape[1], latent_space_size, output_size]
        lane = _round_up(max(widths), _LANE_ALIGN)

        blocks, layout, row = [], {}, 0
        for i, (w, b) in enumerate(self.hiddens):
            L, in_f = w.shape
            wr = _round_up(L, _ROW_ALIGN)
            layout[f"w{i}"] = (row, L, in_f)
            blocks.append(_pad2d(w, wr, lane))
            row += wr
            layout[f"b{i}"] = (row, L)
            blocks.append(_pad2d(b.reshape(1, -1), _ROW_ALIGN, lane))
            row += _ROW_ALIGN
        O, K = head_w.shape
        owr = _round_up(O, _ROW_ALIGN)
        layout["head_w"] = (row, O, K)
        blocks.append(_pad2d(head_w, owr, lane))
        row += owr
        layout["head_b"] = (row, O)
        blocks.append(_pad2d(head_b.reshape(1, -1), _ROW_ALIGN, lane))
        row += _ROW_ALIGN

        self.packed = jnp.concatenate(blocks, axis=0)   # [row, lane], one DMA
        self.layout = layout

    def __call__(self, x):
        S = self.sequence_length
        if S > 1:
            bsz, seq, _ = x.shape
            assert seq == S
            x_index = lambda i: (0, 0, 0)
        else:
            bsz, _ = x.shape
            x_index = lambda i: (0, 0)

        kernel = functools.partial(
            _decoder_mlp_kernel,
            layout=self.layout,
            num_hidden=len(self.hiddens),
            seq=S if S > 1 else 1,
            batch=bsz,
        )

        return pl.pallas_call(
            kernel,
            out_shape=jax.ShapeDtypeStruct((bsz, self.output_size), x.dtype),
            grid=(1,),
            in_specs=[
                pl.BlockSpec(x.shape, x_index),
                pl.BlockSpec(self.packed.shape, lambda i: (0, 0)),
            ],
            out_specs=pl.BlockSpec((bsz, self.output_size), lambda i: (0, 0)),
            compiler_params=pltpu.CompilerParams(
                dimension_semantics=("arbitrary",)),
        )(x, self.packed)


# ------------------------------- JAX reference -------------------------------

def reference_forward(model, x):
    hi = jax.lax.Precision.HIGHEST
    if model.sequence_length > 1:
        h = x
        for w, b in model.hiddens:
            h = jax.nn.relu(jnp.einsum("bsf,nf->bsn", h, w, precision=hi) + b)
        per_pos = jnp.einsum("bsf,snf->bsn", h, model.out_w, precision=hi) + model.out_b
        return per_pos.sum(axis=1)
    h = x
    for w, b in model.hiddens:
        h = jax.nn.relu(jnp.dot(h, w.T, precision=hi) + b)
    return jnp.dot(h, model.out_w.T, precision=hi) + model.out_b


# ------------------------------------ main ------------------------------------

if __name__ == "__main__":
    key = jax.random.PRNGKey(0)
    k_param, k_param1, k_x, k_x1 = jax.random.split(key, 4)

    batch = 8
    seq = 4
    input_size = 32
    latent = 32
    output_size = 16
    layer_num = 2

    # Multi-node head path (sequence_length > 1): head K = seq*latent = 128.
    model = DecoderMLPPallas(input_size, latent, output_size, layer_num, seq, k_param)
    x = jax.random.normal(k_x, (batch, seq, input_size), jnp.float32)
    out = jax.block_until_ready(model(x))
    assert out.shape == (batch, output_size), out.shape
    ref = reference_forward(model, x)
    assert jnp.allclose(out, ref, atol=1e-4, rtol=1e-4), (
        float(jnp.max(jnp.abs(out - ref))))

    # Plain Linear head path (sequence_length <= 1).
    model1 = DecoderMLPPallas(input_size, latent, output_size, layer_num, 1, k_param1)
    x1 = jax.random.normal(k_x1, (batch, input_size), jnp.float32)
    out1 = jax.block_until_ready(model1(x1))
    assert out1.shape == (batch, output_size), out1.shape
    ref1 = reference_forward(model1, x1)
    assert jnp.allclose(out1, ref1, atol=1e-4, rtol=1e-4), (
        float(jnp.max(jnp.abs(out1 - ref1))))

    print("KERNEL_OK")
</pallas_src>

<mosaic_0001>
module attributes {stable_mosaic.version = 11 : i64} {
  func.func @_decoder_mlp_kernel(%arg0: i32, %arg1: memref<8x4x32xf32, #tpu.memory_space<vmem>>, %arg2: memref<104x128xf32, #tpu.memory_space<vmem>>, %arg3: memref<8x16xf32, #tpu.memory_space<vmem>>) attributes {dimension_semantics = [#tpu.dimension_semantics<arbitrary>], iteration_bounds = array<i64: 1>, scalar_prefetch = 0 : i64, scratch_operands = 0 : i64, tpu.core_type = #tpu.core_type<tc>, window_params = [{pipeline_mode = #tpu.pipeline_mode<synchronous>, transform_indices = @transform_0, window_bounds = array<i64: 8, 4, 32>}, {pipeline_mode = #tpu.pipeline_mode<synchronous>, transform_indices = @transform_1, window_bounds = array<i64: 104, 128>}, {pipeline_mode = #tpu.pipeline_mode<synchronous>, transform_indices = @transform_2, window_bounds = array<i64: 8, 16>}]} {
    %c0 = arith.constant 0 : index
    %c0_0 = arith.constant 0 : index
    %c0_1 = arith.constant 0 : index
    %0 = vector.load %arg1[%c0, %c0_0, %c0_1] : memref<8x4x32xf32, #tpu.memory_space<vmem>>, vector<8x4x32xf32>
    %1 = vector.extract_strided_slice %0 {offsets = [0, 0, 0], sizes = [8, 1, 32], strides = [1, 1, 1]} : vector<8x4x32xf32> to vector<8x1x32xf32>
    %2 = vector.shape_cast %1 : vector<8x1x32xf32> to vector<8x32xf32>
    %3 = vector.extract_strided_slice %0 {offsets = [0, 1, 0], sizes = [8, 1, 32], strides = [1, 1, 1]} : vector<8x4x32xf32> to vector<8x1x32xf32>
    %4 = vector.shape_cast %3 : vector<8x1x32xf32> to vector<8x32xf32>
    %5 = vector.extract_strided_slice %0 {offsets = [0, 2, 0], sizes = [8, 1, 32], strides = [1, 1, 1]} : vector<8x4x32xf32> to vector<8x1x32xf32>
    %6 = vector.shape_cast %5 : vector<8x1x32xf32> to vector<8x32xf32>
    %7 = vector.extract_strided_slice %0 {offsets = [0, 3, 0], sizes = [8, 1, 32], strides = [1, 1, 1]} : vector<8x4x32xf32> to vector<8x1x32xf32>
    %8 = vector.shape_cast %7 : vector<8x1x32xf32> to vector<8x32xf32>
    %9 = tpu.concatenate %2, %4, %6, %8 in 0 : vector<8x32xf32>, vector<8x32xf32>, vector<8x32xf32>, vector<8x32xf32> -> vector<32x32xf32>
    %c0_2 = arith.constant 0 : index
    %c0_3 = arith.constant 0 : index
    %10 = vector.load %arg2[%c0_2, %c0_3] : memref<104x128xf32, #tpu.memory_space<vmem>>, vector<32x32xf32>
    %c32 = arith.constant 32 : index
    %c0_4 = arith.constant 0 : index
    %11 = vector.load %arg2[%c32, %c0_4] : memref<104x128xf32, #tpu.memory_space<vmem>>, vector<1x32xf32>
    %cst = arith.constant dense<0.000000e+00> : vector<32x32xf32>
    %12 = tpu.matmul %9, %10, %cst {dimension_numbers = #tpu.dot_dimension_numbers<[1], [1], [0], [0], [0, 0, 1, 0], [], []>} : vector<32x32xf32>, vector<32x32xf32>, vector<32x32xf32> -> vector<32x32xf32>
    %13 = vector.broadcast %11 : vector<1x32xf32> to vector<32x32xf32>
    %14 = arith.addf %12, %13 : vector<32x32xf32>
    %cst_5 = arith.constant 0.000000e+00 : f32
    %15 = vector.broadcast %cst_5 : f32 to vector<32x32xf32>
    %16 = arith.maximumf %14, %15 : vector<32x32xf32>
    %c40 = arith.constant 40 : index
    %c0_6 = arith.constant 0 : index
    %17 = vector.load %arg2[%c40, %c0_6] : memref<104x128xf32, #tpu.memory_space<vmem>>, vector<32x32xf32>
    %c72 = arith.constant 72 : index
    %c0_7 = arith.constant 0 : index
    %18 = vector.load %arg2[%c72, %c0_7] : memref<104x128xf32, #tpu.memory_space<vmem>>, vector<1x32xf32>
    %cst_8 = arith.constant dense<0.000000e+00> : vector<32x32xf32>
    %19 = tpu.matmul %16, %17, %cst_8 {dimension_numbers = #tpu.dot_dimension_numbers<[1], [1], [0], [0], [0, 0, 1, 0], [], []>} : vector<32x32xf32>, vector<32x32xf32>, vector<32x32xf32> -> vector<32x32xf32>
    %20 = vector.broadcast %18 : vector<1x32xf32> to vector<32x32xf32>
    %21 = arith.addf %19, %20 : vector<32x32xf32>
    %cst_9 = arith.constant 0.000000e+00 : f32
    %22 = vector.broadcast %cst_9 : f32 to vector<32x32xf32>
    %23 = arith.maximumf %21, %22 : vector<32x32xf32>
    %24 = vector.extract_strided_slice %23 {offsets = [0, 0], sizes = [8, 32], strides = [1, 1]} : vector<32x32xf32> to vector<8x32xf32>
    %25 = vector.extract_strided_slice %23 {offsets = [8, 0], sizes = [8, 32], strides = [1, 1]} : vector<32x32xf32> to vector<8x32xf32>
    %26 = vector.extract_strided_slice %23 {offsets = [16, 0], sizes = [8, 32], strides = [1, 1]} : vector<32x32xf32> to vector<8x32xf32>
    %27 = vector.extract_strided_slice %23 {offsets = [24, 0], sizes = [8, 32], strides = [1, 1]} : vector<32x32xf32> to vector<8x32xf32>
    %28 = tpu.concatenate %24, %25, %26, %27 in 1 : vector<8x32xf32>, vector<8x32xf32>, vector<8x32xf32>, vector<8x32xf32> -> vector<8x128xf32>
    %c80 = arith.constant 80 : index
    %c0_10 = arith.constant 0 : index
    %29 = vector.load %arg2[%c80, %c0_10] : memref<104x128xf32, #tpu.memory_space<vmem>>, vector<16x128xf32>
    %c96 = arith.constant 96 : index
    %c0_11 = arith.constant 0 : index
    %30 = vector.load %arg2[%c96, %c0_11] : memref<104x128xf32, #tpu.memory_space<vmem>>, vector<1x16xf32>
    %cst_12 = arith.constant dense<0.000000e+00> : vector<8x16xf32>
    %31 = tpu.matmul %28, %29, %cst_12 {dimension_numbers = #tpu.dot_dimension_numbers<[1], [1], [0], [0], [0, 0, 1, 0], [], []>} : vector<8x128xf32>, vector<16x128xf32>, vector<8x16xf32> -> vector<8x16xf32>
    %32 = vector.broadcast %30 : vector<1x16xf32> to vector<8x16xf32>
    %33 = arith.addf %31, %32 : vector<8x16xf32>
    %c0_13 = arith.constant 0 : index
    %c0_14 = arith.constant 0 : index
    %34 = vector.load %arg3[%c0_13, %c0_14] : memref<8x16xf32, #tpu.memory_space<vmem>>, vector<8x16xf32>
    tpu.vector_store %arg3[%c0_13, %c0_14], %33 {strides = array<i32>} : memref<8x16xf32, #tpu.memory_space<vmem>>, vector<8x16xf32>,
    return
  }
  func.func @transform_0(%arg0: i32) -> (i32, i32, i32) {
    %c0_i32 = arith.constant 0 : i32
    %c0_i32_0 = arith.constant 0 : i32
    %c0_i32_1 = arith.constant 0 : i32
    %c0_i32_2 = arith.constant 0 : i32
    return %c0_i32, %c0_i32_0, %c0_i32_1 : i32, i32, i32
  }
  func.func @transform_1(%arg0: i32) -> (i32, i32) {
    %c0_i32 = arith.constant 0 : i32
    %c0_i32_0 = arith.constant 0 : i32
    %c0_i32_1 = arith.constant 0 : i32
    return %c0_i32, %c0_i32_0 : i32, i32
  }
  func.func @transform_2(%arg0: i32) -> (i32, i32) {
    %c0_i32 = arith.constant 0 : i32
    %c0_i32_0 = arith.constant 0 : i32
    %c0_i32_1 = arith.constant 0 : i32
    return %c0_i32, %c0_i32_0 : i32, i32
  }
}

</mosaic_0001>

<llo_original>
// kernel: tpu_custom_call.1
$region0: #{tpu_custom_call.1}
  #allocation0 [shape = 'u32[]', space=smem, size = 0x4, offset = 0x4, fixed_abs, tag = 'smem constant byte address 0x4 - core index']
  #allocation1 [shape = 'u32[72,128]{1,0:T(1,128)}', space=vmem, size = 0x9000, scoped, tag = 'internal scratch']
  %s0 = inlined_call_operand.hbm [shape: f32[8,4,32], index: 0, kind: input, shape index: {}]
  %s1 = inlined_call_operand.hbm [shape: f32[104,128], index: 1, kind: input, shape index: {}]
  %s2 = inlined_call_operand.hbm [shape: f32[8,16], index: 2, kind: output, shape index: {}]
  %s3 = sld [smem:[#allocation0]]
  $region26: #{tpu_custom_call.1} parent=0
    _
  %s5 = ssub.s32 1, %s3
  %s6 = scalar_select 0, %s5, %s3
  $region1: #{tpu_custom_call.1} parent=0
    #allocation2 [shape = 'u8[16384]{0}', space=vmem, size = 0x4000, scoped, tag = 'input window, operand 0, single buffered']
    #allocation3 [shape = 's32[1]{0}', space=sflag, size = 0x4, scoped, tag = 'scoped memory for tpu_custom_call.1']
    #allocation4 [shape = 's32[1]{0}', space=sflag, size = 0x4, scoped, tag = 'scoped memory for tpu_custom_call.1']
    #allocation5 [shape = 'u8[53248]{0}', space=vmem, size = 0xd000, scoped, tag = 'input window, operand 1, single buffered']
    #allocation6 [shape = 's32[1]{0}', space=sflag, size = 0x4, scoped, tag = 'scoped memory for tpu_custom_call.1']
    #allocation7 [shape = 'u8[4096]{0}', space=vmem, size = 0x1000, scoped, tag = 'output window, operand 0, single buffered']
    %7 = vsyncpa [#allocation3], 0
    %8 = vsyncpa [#allocation6], 0
    %9 = vsyncpa [#allocation4], 0
    // Predicated region
    $region2: #{tpu_custom_call.1} parent=1 // pred_check
      _
    $region3: #{tpu_custom_call.1} parent=1 // pred_check_branch
      %11 = sbr.rel (0) target = $region5
    $region4: #{tpu_custom_call.1} parent=1 // pred_region
      %13 = vsyncadd [#allocation3], 0
      %s14 = sshll.u32 %s0, 4
      %s15 = int_to_ptr.hbm [resolvable:$true] %s14
      %s16 = sshll.u32 [#allocation2], 4
      %s17 = int_to_ptr.vmem [resolvable:$true] %s16
      %22 = dma.hbm_to_vmem [thread:$0]  %s15, 512, %s17, [#allocation3], 64, 64, 4
    $region5: #{tpu_custom_call.1} parent=1 // pred_fallthru
      _
    // Predicated region
    $region6: #{tpu_custom_call.1} parent=1 // pred_check
      _
    $region7: #{tpu_custom_call.1} parent=1 // pred_check_branch
      %24 = sbr.rel (0) target = $region9
    $region8: #{tpu_custom_call.1} parent=1 // pred_region
      %26 = vsyncadd [#allocation6], 0
      %s27 = sshll.u32 %s1, 4
      %s28 = int_to_ptr.hbm [resolvable:$true] %s27
      %s29 = sshll.u32 [#allocation5], 4
      %s30 = int_to_ptr.vmem [resolvable:$true] %s29
      %35 = dma.hbm_to_vmem [thread:$0]  %s28, 1664, %s30, [#allocation6], 128, 128, 8
    $region9: #{tpu_custom_call.1} parent=1 // pred_fallthru
      _
    // Predicated region
    $region10: #{tpu_custom_call.1} parent=1 // pred_check
      _
    $region11: #{tpu_custom_call.1} parent=1 // pred_check_branch
      %37 = sbr.rel (0) target = $region13
    $region12: #{tpu_custom_call.1} parent=1 // pred_region
      %39 = dma.done [#allocation3], 512
    $region13: #{tpu_custom_call.1} parent=1 // pred_fallthru
      _
    // Predicated region
    $region14: #{tpu_custom_call.1} parent=1 // pred_check
      _
    $region15: #{tpu_custom_call.1} parent=1 // pred_check_branch
      %41 = sbr.rel (0) target = $region17
    $region16: #{tpu_custom_call.1} parent=1 // pred_region
      %43 = dma.done [#allocation6], 1664
    $region17: #{tpu_custom_call.1} parent=1 // pred_fallthru
      _
    %v44 = vld [vmem:[#allocation2] sm:$0xf]
    %v45 = vld [vmem:[#allocation2 + $0x4] sm:$0xf]
    %v46 = vld [vmem:[#allocation2 + $0x8] sm:$0xf]
    %v47 = vld [vmem:[#allocation2 + $0xc] sm:$0xf]
    %v48 = vld [vmem:[#allocation2 + $0x10] sm:$0xf]
    %v49 = vld [vmem:[#allocation2 + $0x14] sm:$0xf]
    %v50 = vld [vmem:[#allocation2 + $0x18] sm:$0xf]
    %v51 = vld [vmem:[#allocation2 + $0x1c] sm:$0xf]
    %v60 = vrot.slane %v45, 7
    %vm61 = vcmask 1041409
    %v62 = vsel %vm61, %v60, %v44
    %v63 = vrot.slane %v46, 6
    %vm64 = vcmask 1042434
    %v65 = vsel %vm64, %v63, %v62
    %v66 = vrot.slane %v47, 5
    %vm67 = vcmask 1043459
    %v68 = vsel %vm67, %v66, %v65
    %v69 = vrot.slane %v48, 4
    %vm70 = vcmask 1044484
    %v71 = vsel %vm70, %v69, %v68
    %v72 = vrot.slane %v49, 3
    %vm73 = vcmask 1045509
    %v74 = vsel %vm73, %v72, %v71
    %v75 = vrot.slane %v50, 2
    %vm76 = vcmask 1046534
    %v77 = vsel %vm76, %v75, %v74
    %v78 = vrot.slane %v51, 1
    %vm79 = vcmask 1047559
    %v80 = vsel %vm79, %v78, %v77
    %v81 = vrot.slane %v44, 1
    %v82 = vsel %vm61, %v45, %v81
    %v83 = vrot.slane %v46, 7
    %v84 = vsel %vm64, %v83, %v82
    %v85 = vrot.slane %v47, 6
    %v86 = vsel %vm67, %v85, %v84
    %v87 = vrot.slane %v48, 5
    %v88 = vsel %vm70, %v87, %v86
    %v89 = vrot.slane %v49, 4
    %v90 = vsel %vm73, %v89, %v88
    %v91 = vrot.slane %v50, 3
    %v92 = vsel %vm76, %v91, %v90
    %v93 = vrot.slane %v51, 2
    %v94 = vsel %vm79, %v93, %v92
    %v95 = vrot.slane %v44, 2
    %v96 = vrot.slane %v45, 1
    %v97 = vsel %vm61, %v96, %v95
    %v98 = vsel %vm64, %v46, %v97
    %v99 = vrot.slane %v47, 7
    %v100 = vsel %vm67, %v99, %v98
    %v101 = vrot.slane %v48, 6
    %v102 = vsel %vm70, %v101, %v100
    %v103 = vrot.slane %v49, 5
    %v104 = vsel %vm73, %v103, %v102
    %v105 = vrot.slane %v50, 4
    %v106 = vsel %vm76, %v105, %v104
    %v107 = vrot.slane %v51, 3
    %v108 = vsel %vm79, %v107, %v106
    %v109 = vrot.slane %v44, 3
    %v110 = vrot.slane %v45, 2
    %v111 = vsel %vm61, %v110, %v109
    %v112 = vrot.slane %v46, 1
    %v113 = vsel %vm64, %v112, %v111
    %v114 = vsel %vm67, %v47, %v113
    %v115 = vrot.slane %v48, 7
    %v116 = vsel %vm70, %v115, %v114
    %v117 = vrot.slane %v49, 6
    %v118 = vsel %vm73, %v117, %v116
    %v119 = vrot.slane %v50, 5
    %v120 = vsel %vm76, %v119, %v118
    %v121 = vrot.slane %v51, 4
    %v122 = vsel %vm79, %v121, %v120
    %v123 = vld [vmem:[#allocation5] sm:$0xff]
    %v124 = vld [vmem:[#allocation5 + $0x8] sm:$0xff]
    %v125 = vld [vmem:[#allocation5 + $0x10] sm:$0xff]
    %v126 = vld [vmem:[#allocation5 + $0x18] sm:$0xff]
    %v127 = vld [vmem:[#allocation5 + $0x20] sm:$0x1]
    %v128 = vperm.slane %v127, 0
    %vm129 = vcmask 261120
    %v130 = vsel %vm129, %v80, 0
    %v132 = vsel %vm129, %v94, 0
    %v134 = vsel %vm129, %v108, 0
    %v136 = vsel %vm129, %v122, 0
    %v139 = vsel %vm129, %v123, 0
    %v142 = vsel %vm129, %v124, 0
    %v145 = vsel %vm129, %v125, 0
    %v148 = vsel %vm129, %v126, 0
    %150 = vmatpush.xpose.msra.mxu0 0.0
    %151 = vmatpush.xpose.msra.mxu0 0.0
    %152 = vmatpush.xpose.msra.mxu0 0.0
    %153 = vmatpush.xpose.msra.mxu0 0.0
    %154 = vmatpush.xpose.msra.mxu0 0.0
    %155 = vmatpush.xpose.msra.mxu0 0.0
    %156 = vmatpush.xpose.msra.mxu0 0.0
    %157 = vmatpush.xpose.msra.mxu0 0.0
    %158 = vmatpush.xpose.msra.mxu0 0.0
    %159 = vmatpush.xpose.msra.mxu0 0.0
    %160 = vmatpush.xpose.msra.mxu0 0.0
    %161 = vmatpush.xpose.msra.mxu0 0.0
    %162 = vmatpush.xpose.msra.mxu0 %v148
    %163 = vmatpush.xpose.msra.mxu0 %v145
    %164 = vmatpush.xpose.msra.mxu0 %v142
    %165 = vmatpush.xpose.msra.mxu0 %v139
    %166 = vmatmul.f32.gmra.mxu0 %v130
    %v167 = vpop.f32.mrf.mxu0
    %v168 = vadd.f32 %v128, %v167
    %169 = vmatmul.f32.gmra.mxu0 %v132
    %v170 = vpop.f32.mrf.mxu0
    %v171 = vadd.f32 %v128, %v170
    %172 = vmatmul.f32.gmra.mxu0 %v134
    %v173 = vpop.f32.mrf.mxu0
    %v174 = vadd.f32 %v128, %v173
    %175 = vmatmul.f32.gmra.mxu0 %v136
    %v176 = vpop.f32.mrf.mxu0
    %v177 = vadd.f32 %v128, %v176
    %178 = vdwg.mxu0
    %v179 = vmax.f32 %v168, 0.0
    %v180 = vmax.f32 %v171, 0.0
    %v181 = vmax.f32 %v174, 0.0
    %v182 = vmax.f32 %v177, 0.0
    %v183 = vld [vmem:[#allocation5 + $0x28] sm:$0xff]
    %v184 = vld [vmem:[#allocation5 + $0x30] sm:$0xff]
    %v185 = vld [vmem:[#allocation5 + $0x38] sm:$0xff]
    %v186 = vld [vmem:[#allocation5 + $0x40] sm:$0xff]
    %v187 = vld [vmem:[#allocation5 + $0x48] sm:$0x1]
    %v188 = vperm.slane %v187, 0
    %v190 = vsel %vm129, %v179, 0
    %v193 = vsel %vm129, %v180, 0
    %v196 = vsel %vm129, %v181, 0
    %v199 = vsel %vm129, %v182, 0
    %v202 = vsel %vm129, %v183, 0
    %v205 = vsel %vm129, %v184, 0
    %v208 = vsel %vm129, %v185, 0
    %v211 = vsel %vm129, %v186, 0
    %213 = vmatpush.xpose.msra.mxu0 0.0
    %214 = vmatpush.xpose.msra.mxu0 0.0
    %215 = vmatpush.xpose.msra.mxu0 0.0
    %216 = vmatpush.xpose.msra.mxu0 0.0
    %217 = vmatpush.xpose.msra.mxu0 0.0
    %218 = vmatpush.xpose.msra.mxu0 0.0
    %219 = vmatpush.xpose.msra.mxu0 0.0
    %220 = vmatpush.xpose.msra.mxu0 0.0
    %221 = vmatpush.xpose.msra.mxu0 0.0
    %222 = vmatpush.xpose.msra.mxu0 0.0
    %223 = vmatpush.xpose.msra.mxu0 0.0
    %224 = vmatpush.xpose.msra.mxu0 0.0
    %225 = vmatpush.xpose.msra.mxu0 %v211
    %226 = vmatpush.xpose.msra.mxu0 %v208
    %227 = vmatpush.xpose.msra.mxu0 %v205
    %228 = vmatpush.xpose.msra.mxu0 %v202
    %229 = vmatmul.f32.gmra.mxu0 %v190
    %v230 = vpop.f32.mrf.mxu0
    %v231 = vadd.f32 %v188, %v230
    %232 = vmatmul.f32.gmra.mxu0 %v193
    %v233 = vpop.f32.mrf.mxu0
    %v234 = vadd.f32 %v188, %v233
    %235 = vmatmul.f32.gmra.mxu0 %v196
    %v236 = vpop.f32.mrf.mxu0
    %v237 = vadd.f32 %v188, %v236
    %238 = vmatmul.f32.gmra.mxu0 %v199
    %v239 = vpop.f32.mrf.mxu0
    %v240 = vadd.f32 %v188, %v239
    %241 = vdwg.mxu0
    %v242 = vmax.f32 %v231, 0.0
    %v243 = vmax.f32 %v234, 0.0
    %v244 = vmax.f32 %v237, 0.0
    %v245 = vmax.f32 %v240, 0.0
    %247 = vrot.lane.b32.xlu0 %v243, 32
    %v248 = vpop.permute.xlu0 %247
    %251 = vrot.lane.b32.xlu0 %v244, 64
    %v252 = vpop.permute.xlu0 %251
    %255 = vrot.lane.b32.xlu0 %v245, 96
    %v256 = vpop.permute.xlu0 %255
    %v258 = vsel %vm129, %v242, %v248
    %vm259 = vcmask 523264
    %v260 = vsel %vm259, %v258, %v252
    %vm261 = vcmask 785408
    %v262 = vsel %vm261, %v260, %v256
    %v263 = vld [vmem:[#allocation5 + $0x50] sm:$0xff]
    %v264 = vld [vmem:[#allocation5 + $0x58] sm:$0xff]
    %v265 = vld [vmem:[#allocation5 + $0x60] sm:$0x1]
    %v266 = vperm.slane %v265, 0
    %267 = vmatpush.xpose.msra.mxu0 0.0
    %268 = vmatpush.xpose.msra.mxu0 0.0
    %269 = vmatpush.xpose.msra.mxu0 0.0
    %270 = vmatpush.xpose.msra.mxu0 0.0
    %271 = vmatpush.xpose.msra.mxu0 0.0
    %272 = vmatpush.xpose.msra.mxu0 0.0
    %273 = vmatpush.xpose.msra.mxu0 0.0
    %274 = vmatpush.xpose.msra.mxu0 0.0
    %275 = vmatpush.xpose.msra.mxu0 0.0
    %276 = vmatpush.xpose.msra.mxu0 0.0
    %277 = vmatpush.xpose.msra.mxu0 0.0
    %278 = vmatpush.xpose.msra.mxu0 0.0
    %279 = vmatpush.xpose.msra.mxu0 0.0
    %280 = vmatpush.xpose.msra.mxu0 0.0
    %281 = vmatpush.xpose.msra.mxu0 %v264
    %282 = vmatpush.xpose.msra.mxu0 %v263
    %283 = vmatmul.f32.gmra.mxu0 %v262
    %v284 = vpop.f32.mrf.mxu0
    %v285 = vadd.f32 %v266, %v284
    %286 = vdwg.mxu0
    %vm287 = vcmask 130048
    %288 = vst.msk [vmem:[#allocation7] sm:$0xff] %vm287, %v285
    // Predicated region
    $region18: #{tpu_custom_call.1} parent=1 // pred_check
      _
    $region19: #{tpu_custom_call.1} parent=1 // pred_check_branch
      %290 = sbr.rel (0) target = $region21
    $region20: #{tpu_custom_call.1} parent=1 // pred_region
      %292 = vsyncadd [#allocation4], 0
      %s294 = sshll.u32 [#allocation7], 4
      %s295 = int_to_ptr.vmem [resolvable:$true] %s294
      %s296 = sshll.u32 %s2, 4
      %s297 = int_to_ptr.hbm [resolvable:$true] %s296
      %299 = dma.vmem_to_hbm [thread:$0]  %s295, 128, %s297, [#allocation4]
    $region21: #{tpu_custom_call.1} parent=1 // pred_fallthru
      _
    // Predicated region
    $region22: #{tpu_custom_call.1} parent=1 // pred_check
      _
    $region23: #{tpu_custom_call.1} parent=1 // pred_check_branch
      %301 = sbr.rel (0) target = $region25
    $region24: #{tpu_custom_call.1} parent=1 // pred_region
      %303 = dma.done [#allocation4], 128
    $region25: #{tpu_custom_call.1} parent=1 // pred_fallthru
      _
    %304 = vsyncpa [#allocation3], 1
    %305 = vsyncpa [#allocation6], 1
    %306 = vsyncpa [#allocation4], 1

</llo_original>
